<compile_context>
chip_gen: v5e
topology: v5e:2x2
jax: 0.10.0
libtpu: 0.0.40
codegen_flags: <defaults>
</compile_context>

<pallas_src>
import jax
import jax.numpy as jnp
from jax.experimental import pallas as pl
from jax.experimental.pallas import tpu as pltpu

LANE = 128
N_LAYERS = 5
LAYER_DIMS = [(9, 64), (64, 128), (128, 128), (128, 32), (32, 9)]
IN_FEATURES = 9
OUT_FEATURES = 9


def qnetwork_kernel(x_ref, w_ref, b_ref, o_ref, xpad_ref):
    """Fused 5-layer MLP on one narrow (tile, 9) batch block.

    x_ref:    (tile, 9)   f32   narrow input block (real features only).
    w_ref:    (640, 128)        zero-padded weight slab (layer l at rows [l*128,(l+1)*128)),
                                resident across all grid steps, in the MXU input dtype.
    b_ref:    (8, 128)    f32   zero-padded bias slab; row l = bias of layer l.
    o_ref:    (tile, 9)   f32   narrow output block.
    xpad_ref: (tile, 128)       VMEM scratch used to widen the input to a lane-dense
                                MXU operand (padding lives in VMEM only, never HBM).
    """
    # Widen 9 -> 128 lanes in VMEM.  Padded lanes are exact zeros, so they contribute
    # nothing to the first matmul (weight rows 9..127 of layer 1 are also exact zeros).
    xpad_ref[...] = jnp.zeros_like(xpad_ref)
    xpad_ref[:, 0:IN_FEATURES] = x_ref[...].astype(xpad_ref.dtype)
    h = xpad_ref[...]  # (tile, 128) in the MXU input dtype

    for l in range(N_LAYERS):
        w = w_ref[l * LANE:(l + 1) * LANE, :]                    # static (128, 128) slice
        acc = jnp.dot(h, w, preferred_element_type=jnp.float32)  # MXU, f32 accumulate
        acc = acc + b_ref[l:l + 1, :]                            # f32 bias add
        if l < N_LAYERS - 1:
            # ReLU in f32 (v5e VPU has no bf16 ops), cast back to the MXU input dtype.
            h = jnp.maximum(acc, 0.0).astype(w_ref.dtype)
        else:
            # Store only the 9 real output lanes -> narrow HBM write.
            o_ref[...] = acc[:, 0:OUT_FEATURES].astype(o_ref.dtype)


def pack_params(params, matmul_dtype=jnp.bfloat16):
    """Zero-pad every layer to (128, 128)/(1, 128) and pack into two resident slabs.

    NOTE: padded rows/lanes must stay exactly zero for the padded math to be exact.
    """
    w_slab = jnp.zeros((N_LAYERS * LANE, LANE), jnp.float32)
    b_slab = jnp.zeros((8, LANE), jnp.float32)  # 8 rows for sublane alignment
    for l, (fan_in, fan_out) in enumerate(LAYER_DIMS):
        w_slab = w_slab.at[l * LANE:l * LANE + fan_in, :fan_out].set(params[f"w{l + 1}"])
        b_slab = b_slab.at[l, :fan_out].set(params[f"b{l + 1}"][0])
    return w_slab.astype(matmul_dtype), b_slab  # biases stay f32


def _round_up(x, m):
    return ((x + m - 1) // m) * m


def qnetwork_forward(x, params, *, batch_tile=4096, matmul_dtype=jnp.bfloat16):
    """x: (B, 9) float32.  params: dict of (in, out) weights and (1, out) biases.

    matmul_dtype=jnp.bfloat16 (default) = fast MXU path with f32 accumulate.
    matmul_dtype=jnp.float32            = strict numerics matching the PyTorch module.
    """
    B, f_in = x.shape
    assert f_in == IN_FEATURES
    x = x.astype(jnp.float32)

    w_slab, b_slab = pack_params(params, matmul_dtype)

    # Batch tile: multiple of 8 sublanes; big tiles amortize the ~0.35us per-step
    # overhead, but keep >= 2 grid steps when possible so v7x's two TensorCores both
    # get work on the "parallel" batch axis.
    rows = _round_up(max(B, 8), 8)
    tile = min(int(batch_tile), rows)
    if rows >= 16:
        tile = min(tile, _round_up(pl.cdiv(rows, 2), 8))
    tile = max(8, (tile // 8) * 8)
    b_pad = _round_up(max(B, tile), tile)

    # Only row padding (to a tile multiple) ever happens in the wrapper, and only when
    # B is not already a multiple of the tile.  Lane padding happens in-kernel in VMEM.
    x_in = x if b_pad == B else jnp.zeros((b_pad, IN_FEATURES), jnp.float32).at[:B].set(x)

    grid = (b_pad // tile,)

    out = pl.pallas_call(
        qnetwork_kernel,
        out_shape=jax.ShapeDtypeStruct((b_pad, OUT_FEATURES), jnp.float32),
        grid_spec=pltpu.PrefetchScalarGridSpec(
            num_scalar_prefetch=0,
            grid=grid,
            in_specs=[
                pl.BlockSpec((tile, IN_FEATURES), lambda i: (i, 0)),          # streamed narrow x
                pl.BlockSpec((N_LAYERS * LANE, LANE), lambda i: (0, 0)),      # resident weights
                pl.BlockSpec((8, LANE), lambda i: (0, 0)),                    # resident biases
            ],
            out_specs=pl.BlockSpec((tile, OUT_FEATURES), lambda i: (i, 0)),   # narrow output
            scratch_shapes=[pltpu.VMEM((tile, LANE), matmul_dtype)],          # lane-pad scratch
        ),
        compiler_params=pltpu.CompilerParams(
            dimension_semantics=("parallel",),
        ),
    )(x_in, w_slab, b_slab)

    return out if b_pad == B else out[:B]


def init_params(key):
    """PyTorch-style default Linear init: U[-1/sqrt(fan_in), 1/sqrt(fan_in)]."""
    params = {}
    keys = jax.random.split(key, 2 * len(LAYER_DIMS))
    for idx, (fan_in, fan_out) in enumerate(LAYER_DIMS):
        bound = 1.0 / jnp.sqrt(float(fan_in))
        wk, bk = keys[2 * idx], keys[2 * idx + 1]
        params[f"w{idx + 1}"] = jax.random.uniform(
            wk, (fan_in, fan_out), jnp.float32, minval=-bound, maxval=bound)
        params[f"b{idx + 1}"] = jax.random.uniform(
            bk, (1, fan_out), jnp.float32, minval=-bound, maxval=bound)
    return params


def reference_forward(x, params):
    hp = jax.lax.Precision.HIGHEST
    h = x
    for l in range(1, N_LAYERS):
        h = jnp.maximum(jnp.dot(h, params[f"w{l}"], precision=hp) + params[f"b{l}"], 0.0)
    return jnp.dot(h, params[f"w{N_LAYERS}"], precision=hp) + params[f"b{N_LAYERS}"]


if __name__ == "__main__":
    key = jax.random.PRNGKey(0)
    pkey, xkey = jax.random.split(key)
    params = init_params(pkey)

    # Small batch of tic-tac-toe board states, shape (B, 9) like the PyTorch module.
    B = 8
    x = jax.random.uniform(xkey, (B, IN_FEATURES), jnp.float32, minval=-1.0, maxval=1.0)
    ref = reference_forward(x, params)

    # 1) Default fast path: bf16 MXU inputs, f32 accumulate (not bit-comparable to PyTorch).
    out_bf16 = jax.block_until_ready(qnetwork_forward(x, params))
    assert out_bf16.shape == (B, OUT_FEATURES)
    assert jnp.allclose(out_bf16, ref, atol=5e-2, rtol=5e-2), "bf16 mismatch vs reference"

    # 2) Strict-numerics f32 path.
    out_f32 = jax.block_until_ready(qnetwork_forward(x, params, matmul_dtype=jnp.float32))
    assert jnp.allclose(out_f32, ref, atol=1e-4, rtol=1e-4), "f32 mismatch vs reference"

    # 3) Multi-step grid with a ragged batch (exercises tiling, row padding, megacore split).
    B2 = 50
    x2 = jax.random.uniform(jax.random.PRNGKey(1), (B2, IN_FEATURES), jnp.float32,
                            minval=-1.0, maxval=1.0)
    ref2 = reference_forward(x2, params)
    out2 = jax.block_until_ready(
        qnetwork_forward(x2, params, batch_tile=16, matmul_dtype=jnp.float32))
    assert out2.shape == (B2, OUT_FEATURES)
    assert jnp.allclose(out2, ref2, atol=1e-4, rtol=1e-4), "tiled f32 mismatch vs reference"

    out3 = jax.block_until_ready(qnetwork_forward(x2, params, batch_tile=16))
    assert jnp.allclose(out3, ref2, atol=5e-2, rtol=5e-2), "tiled bf16 mismatch vs reference"

    print("KERNEL_OK")
</pallas_src>

<mosaic_0001>
module attributes {stable_mosaic.version = 11 : i64} {
  func.func @qnetwork_kernel(%arg0: i32, %arg1: memref<8x9xf32, #tpu.memory_space<vmem>>, %arg2: memref<640x128xbf16, #tpu.memory_space<vmem>>, %arg3: memref<8x128xf32, #tpu.memory_space<vmem>>, %arg4: memref<8x9xf32, #tpu.memory_space<vmem>>, %arg5: memref<8x128xbf16, #tpu.memory_space<vmem>>) attributes {dimension_semantics = [#tpu.dimension_semantics<parallel>], iteration_bounds = array<i64: 1>, scalar_prefetch = 0 : i64, scratch_operands = 1 : i64, tpu.core_type = #tpu.core_type<tc>, window_params = [{transform_indices = @transform_0, window_bounds = array<i64: 8, 9>}, {pipeline_mode = #tpu.pipeline_mode<synchronous>, transform_indices = @transform_1, window_bounds = array<i64: 640, 128>}, {pipeline_mode = #tpu.pipeline_mode<synchronous>, transform_indices = @transform_2, window_bounds = array<i64: 8, 128>}, {transform_indices = @transform_3, window_bounds = array<i64: 8, 9>}]} {
    %cst = arith.constant 0.000000e+00 : bf16
    %0 = vector.broadcast %cst : bf16 to vector<8x128xbf16>
    %c0 = arith.constant 0 : index
    %c0_0 = arith.constant 0 : index
    %1 = vector.load %arg5[%c0, %c0_0] : memref<8x128xbf16, #tpu.memory_space<vmem>>, vector<8x128xbf16>
    tpu.vector_store %arg5[%c0, %c0_0], %0 {strides = array<i32>} : memref<8x128xbf16, #tpu.memory_space<vmem>>, vector<8x128xbf16>,
    %c0_1 = arith.constant 0 : index
    %c0_2 = arith.constant 0 : index
    %2 = vector.load %arg1[%c0_1, %c0_2] : memref<8x9xf32, #tpu.memory_space<vmem>>, vector<8x9xf32>
    %3 = arith.truncf %2 : vector<8x9xf32> to vector<8x9xbf16>
    %c0_3 = arith.constant 0 : index
    %c0_4 = arith.constant 0 : index
    %4 = vector.load %arg5[%c0_3, %c0_4] : memref<8x128xbf16, #tpu.memory_space<vmem>>, vector<8x9xbf16>
    tpu.vector_store %arg5[%c0_3, %c0_4], %3 {strides = array<i32>} : memref<8x128xbf16, #tpu.memory_space<vmem>>, vector<8x9xbf16>,
    %c0_5 = arith.constant 0 : index
    %c0_6 = arith.constant 0 : index
    %5 = vector.load %arg5[%c0_5, %c0_6] : memref<8x128xbf16, #tpu.memory_space<vmem>>, vector<8x128xbf16>
    %c0_7 = arith.constant 0 : index
    %c0_8 = arith.constant 0 : index
    %6 = vector.load %arg2[%c0_7, %c0_8] : memref<640x128xbf16, #tpu.memory_space<vmem>>, vector<128x128xbf16>
    %cst_9 = arith.constant dense<0.000000e+00> : vector<8x128xf32>
    %7 = tpu.matmul %5, %6, %cst_9 {dimension_numbers = #tpu.dot_dimension_numbers<[1], [0], [0], [1], [0, 0, 1, 1], [], []>} : vector<8x128xbf16>, vector<128x128xbf16>, vector<8x128xf32> -> vector<8x128xf32>
    %c0_10 = arith.constant 0 : index
    %c0_11 = arith.constant 0 : index
    %8 = vector.load %arg3[%c0_10, %c0_11] : memref<8x128xf32, #tpu.memory_space<vmem>>, vector<1x128xf32>
    %9 = vector.broadcast %8 : vector<1x128xf32> to vector<8x128xf32>
    %10 = arith.addf %7, %9 : vector<8x128xf32>
    %cst_12 = arith.constant 0.000000e+00 : f32
    %11 = vector.broadcast %cst_12 : f32 to vector<8x128xf32>
    %12 = arith.maximumf %10, %11 : vector<8x128xf32>
    %13 = arith.truncf %12 : vector<8x128xf32> to vector<8x128xbf16>
    %c128 = arith.constant 128 : index
    %c0_13 = arith.constant 0 : index
    %14 = vector.load %arg2[%c128, %c0_13] : memref<640x128xbf16, #tpu.memory_space<vmem>>, vector<128x128xbf16>
    %cst_14 = arith.constant dense<0.000000e+00> : vector<8x128xf32>
    %15 = tpu.matmul %13, %14, %cst_14 {dimension_numbers = #tpu.dot_dimension_numbers<[1], [0], [0], [1], [0, 0, 1, 1], [], []>} : vector<8x128xbf16>, vector<128x128xbf16>, vector<8x128xf32> -> vector<8x128xf32>
    %c1 = arith.constant 1 : index
    %c0_15 = arith.constant 0 : index
    %16 = vector.load %arg3[%c1, %c0_15] : memref<8x128xf32, #tpu.memory_space<vmem>>, vector<1x128xf32>
    %17 = vector.broadcast %16 : vector<1x128xf32> to vector<8x128xf32>
    %18 = arith.addf %15, %17 : vector<8x128xf32>
    %cst_16 = arith.constant 0.000000e+00 : f32
    %19 = vector.broadcast %cst_16 : f32 to vector<8x128xf32>
    %20 = arith.maximumf %18, %19 : vector<8x128xf32>
    %21 = arith.truncf %20 : vector<8x128xf32> to vector<8x128xbf16>
    %c256 = arith.constant 256 : index
    %c0_17 = arith.constant 0 : index
    %22 = vector.load %arg2[%c256, %c0_17] : memref<640x128xbf16, #tpu.memory_space<vmem>>, vector<128x128xbf16>
    %cst_18 = arith.constant dense<0.000000e+00> : vector<8x128xf32>
    %23 = tpu.matmul %21, %22, %cst_18 {dimension_numbers = #tpu.dot_dimension_numbers<[1], [0], [0], [1], [0, 0, 1, 1], [], []>} : vector<8x128xbf16>, vector<128x128xbf16>, vector<8x128xf32> -> vector<8x128xf32>
    %c2 = arith.constant 2 : index
    %c0_19 = arith.constant 0 : index
    %24 = vector.load %arg3[%c2, %c0_19] : memref<8x128xf32, #tpu.memory_space<vmem>>, vector<1x128xf32>
    %25 = vector.broadcast %24 : vector<1x128xf32> to vector<8x128xf32>
    %26 = arith.addf %23, %25 : vector<8x128xf32>
    %cst_20 = arith.constant 0.000000e+00 : f32
    %27 = vector.broadcast %cst_20 : f32 to vector<8x128xf32>
    %28 = arith.maximumf %26, %27 : vector<8x128xf32>
    %29 = arith.truncf %28 : vector<8x128xf32> to vector<8x128xbf16>
    %c384 = arith.constant 384 : index
    %c0_21 = arith.constant 0 : index
    %30 = vector.load %arg2[%c384, %c0_21] : memref<640x128xbf16, #tpu.memory_space<vmem>>, vector<128x128xbf16>
    %cst_22 = arith.constant dense<0.000000e+00> : vector<8x128xf32>
    %31 = tpu.matmul %29, %30, %cst_22 {dimension_numbers = #tpu.dot_dimension_numbers<[1], [0], [0], [1], [0, 0, 1, 1], [], []>} : vector<8x128xbf16>, vector<128x128xbf16>, vector<8x128xf32> -> vector<8x128xf32>
    %c3 = arith.constant 3 : index
    %c0_23 = arith.constant 0 : index
    %32 = vector.load %arg3[%c3, %c0_23] : memref<8x128xf32, #tpu.memory_space<vmem>>, vector<1x128xf32>
    %33 = vector.broadcast %32 : vector<1x128xf32> to vector<8x128xf32>
    %34 = arith.addf %31, %33 : vector<8x128xf32>
    %cst_24 = arith.constant 0.000000e+00 : f32
    %35 = vector.broadcast %cst_24 : f32 to vector<8x128xf32>
    %36 = arith.maximumf %34, %35 : vector<8x128xf32>
    %37 = arith.truncf %36 : vector<8x128xf32> to vector<8x128xbf16>
    %c512 = arith.constant 512 : index
    %c0_25 = arith.constant 0 : index
    %38 = vector.load %arg2[%c512, %c0_25] : memref<640x128xbf16, #tpu.memory_space<vmem>>, vector<128x128xbf16>
    %cst_26 = arith.constant dense<0.000000e+00> : vector<8x128xf32>
    %39 = tpu.matmul %37, %38, %cst_26 {dimension_numbers = #tpu.dot_dimension_numbers<[1], [0], [0], [1], [0, 0, 1, 1], [], []>} : vector<8x128xbf16>, vector<128x128xbf16>, vector<8x128xf32> -> vector<8x128xf32>
    %c4 = arith.constant 4 : index
    %c0_27 = arith.constant 0 : index
    %40 = vector.load %arg3[%c4, %c0_27] : memref<8x128xf32, #tpu.memory_space<vmem>>, vector<1x128xf32>
    %41 = vector.broadcast %40 : vector<1x128xf32> to vector<8x128xf32>
    %42 = arith.addf %39, %41 : vector<8x128xf32>
    %43 = vector.extract_strided_slice %42 {offsets = [0, 0], sizes = [8, 9], strides = [1, 1]} : vector<8x128xf32> to vector<8x9xf32>
    %c0_28 = arith.constant 0 : index
    %c0_29 = arith.constant 0 : index
    %44 = vector.load %arg4[%c0_28, %c0_29] : memref<8x9xf32, #tpu.memory_space<vmem>>, vector<8x9xf32>
    tpu.vector_store %arg4[%c0_28, %c0_29], %43 {strides = array<i32>} : memref<8x9xf32, #tpu.memory_space<vmem>>, vector<8x9xf32>,
    return
  }
  func.func @transform_0(%arg0: i32) -> (i32, i32) {
    %c0_i32 = arith.constant 0 : i32
    %c0_i32_0 = arith.constant 0 : i32
    return %arg0, %c0_i32 : i32, i32
  }
  func.func @transform_1(%arg0: i32) -> (i32, i32) {
    %c0_i32 = arith.constant 0 : i32
    %c0_i32_0 = arith.constant 0 : i32
    %c0_i32_1 = arith.constant 0 : i32
    return %c0_i32, %c0_i32_0 : i32, i32
  }
  func.func @transform_2(%arg0: i32) -> (i32, i32) {
    %c0_i32 = arith.constant 0 : i32
    %c0_i32_0 = arith.constant 0 : i32
    %c0_i32_1 = arith.constant 0 : i32
    return %c0_i32, %c0_i32_0 : i32, i32
  }
  func.func @transform_3(%arg0: i32) -> (i32, i32) {
    %c0_i32 = arith.constant 0 : i32
    %c0_i32_0 = arith.constant 0 : i32
    return %arg0, %c0_i32 : i32, i32
  }
}

</mosaic_0001>

<llo_original>
// kernel: tpu_custom_call.1
$region0: #{tpu_custom_call.1}
  #allocation0 [shape = 'u32[]', space=smem, size = 0x4, offset = 0x4, fixed_abs, tag = 'smem constant byte address 0x4 - core index']
  #allocation1 [shape = 'u32[72,128]{1,0:T(1,128)}', space=vmem, size = 0x9000, scoped, tag = 'internal scratch']
  #allocation2 [shape = 'bf16[8,128]{1,0:T(8,128)(2,1)}', space=vmem, size = 0x800, scoped, tag = 'scratch operand']
  %s0 = inlined_call_operand.hbm [shape: f32[8,9], index: 0, kind: input, shape index: {}]
  %s1 = inlined_call_operand.hbm [shape: bf16[640,128], index: 1, kind: input, shape index: {}]
  %s2 = inlined_call_operand.hbm [shape: f32[8,128], index: 2, kind: input, shape index: {}]
  %s3 = inlined_call_operand.hbm [shape: f32[8,9], index: 3, kind: output, shape index: {}]
  %s4 = sld [smem:[#allocation0]]
  $region34: #{tpu_custom_call.1} parent=0
    _
  %s6 = ssub.s32 1, %s4
  %s7 = scalar_select 0, %s6, %s4
  $region1: #{tpu_custom_call.1} parent=0
    #allocation3 [shape = 'u8[4096]{0}', space=vmem, size = 0x1000, scoped, tag = 'input window, operand 0, single buffered']
    #allocation4 [shape = 's32[1]{0}', space=sflag, size = 0x4, scoped, tag = 'scoped memory for tpu_custom_call.1']
    #allocation5 [shape = 's32[1]{0}', space=sflag, size = 0x4, scoped, tag = 'scoped memory for tpu_custom_call.1']
    #allocation6 [shape = 'u8[163840]{0}', space=vmem, size = 0x28000, scoped, tag = 'input window, operand 1, single buffered']
    #allocation7 [shape = 's32[1]{0}', space=sflag, size = 0x4, scoped, tag = 'scoped memory for tpu_custom_call.1']
    #allocation8 [shape = 'u8[4096]{0}', space=vmem, size = 0x1000, scoped, tag = 'input window, operand 2, single buffered']
    #allocation9 [shape = 'u8[4096]{0}', space=vmem, size = 0x1000, scoped, tag = 'output window, operand 0, single buffered']
    %8 = vsyncpa [#allocation4], 0
    %9 = vsyncpa [#allocation7], 0
    %10 = vsyncpa [#allocation5], 0
    // Predicated region
    $region2: #{tpu_custom_call.1} parent=1 // pred_check
      _
    $region3: #{tpu_custom_call.1} parent=1 // pred_check_branch
      %12 = sbr.rel (0) target = $region5
    $region4: #{tpu_custom_call.1} parent=1 // pred_region
      %14 = vsyncadd [#allocation4], 0
      %s16 = sshll.u32 %s0, 4
      %s17 = int_to_ptr.hbm [resolvable:$true] %s16
      %s18 = sshll.u32 [#allocation3], 4
      %s19 = int_to_ptr.vmem [resolvable:$true] %s18
      %21 = dma.hbm_to_vmem [thread:$0]  %s17, 128, %s19, [#allocation4]
    $region5: #{tpu_custom_call.1} parent=1 // pred_fallthru
      _
    // Predicated region
    $region6: #{tpu_custom_call.1} parent=1 // pred_check
      _
    $region7: #{tpu_custom_call.1} parent=1 // pred_check_branch
      %23 = sbr.rel (0) target = $region9
    $region8: #{tpu_custom_call.1} parent=1 // pred_region
      %25 = vsyncadd [#allocation7], 0
      %s26 = sshll.u32 %s1, 4
      %s27 = int_to_ptr.hbm [resolvable:$true] %s26
      %s28 = sshll.u32 [#allocation6], 4
      %s29 = int_to_ptr.vmem [resolvable:$true] %s28
      %34 = dma.hbm_to_vmem [thread:$0]  %s27, 5120, %s29, [#allocation7], 64, 64, 4
    $region9: #{tpu_custom_call.1} parent=1 // pred_fallthru
      _
    // Predicated region
    $region10: #{tpu_custom_call.1} parent=1 // pred_check
      _
    $region11: #{tpu_custom_call.1} parent=1 // pred_check_branch
      %36 = sbr.rel (0) target = $region13
    $region12: #{tpu_custom_call.1} parent=1 // pred_region
      %38 = vsyncadd [#allocation7], 0
      %s40 = sshll.u32 %s2, 4
      %s41 = int_to_ptr.hbm [resolvable:$true] %s40
      %s42 = sshll.u32 [#allocation8], 4
      %s43 = int_to_ptr.vmem [resolvable:$true] %s42
      %45 = dma.hbm_to_vmem [thread:$0]  %s41, 128, %s43, [#allocation7]
    $region13: #{tpu_custom_call.1} parent=1 // pred_fallthru
      _
    // Predicated region
    $region14: #{tpu_custom_call.1} parent=1 // pred_check
      _
    $region15: #{tpu_custom_call.1} parent=1 // pred_check_branch
      %47 = sbr.rel (0) target = $region17
    $region16: #{tpu_custom_call.1} parent=1 // pred_region
      %49 = dma.done [#allocation4], 128
    $region17: #{tpu_custom_call.1} parent=1 // pred_fallthru
      _
    // Predicated region
    $region18: #{tpu_custom_call.1} parent=1 // pred_check
      _
    $region19: #{tpu_custom_call.1} parent=1 // pred_check_branch
      %51 = sbr.rel (0) target = $region21
    $region20: #{tpu_custom_call.1} parent=1 // pred_region
      %53 = dma.done [#allocation7], 5120
    $region21: #{tpu_custom_call.1} parent=1 // pred_fallthru
      _
    // Predicated region
    $region22: #{tpu_custom_call.1} parent=1 // pred_check
      _
    $region23: #{tpu_custom_call.1} parent=1 // pred_check_branch
      %55 = sbr.rel (0) target = $region25
    $region24: #{tpu_custom_call.1} parent=1 // pred_region
      %57 = dma.done [#allocation7], 128
    $region25: #{tpu_custom_call.1} parent=1 // pred_fallthru
      _
    %59 = vst [vmem:[#allocation2] sm:$0xf] 0
    %v60 = vld [vmem:[#allocation3] sm:$0xff]
    %v61 = vpack.c.bf16 %v60, %v60
    %vm62 = vcmask 68608
    %63 = vst.msk [vmem:[#allocation2] sm:$0xf] %vm62, %v61
    %v64 = vld [vmem:[#allocation2] sm:$0xf]
    %v65 = vld [vmem:[#allocation6] sm:$0xf]
    %v66 = vld [vmem:[#allocation6 + $0x4] sm:$0xf]
    %v67 = vld [vmem:[#allocation6 + $0x8] sm:$0xf]
    %v68 = vld [vmem:[#allocation6 + $0xc] sm:$0xf]
    %v69 = vld [vmem:[#allocation6 + $0x10] sm:$0xf]
    %v70 = vld [vmem:[#allocation6 + $0x14] sm:$0xf]
    %v71 = vld [vmem:[#allocation6 + $0x18] sm:$0xf]
    %v72 = vld [vmem:[#allocation6 + $0x1c] sm:$0xf]
    %v73 = vld [vmem:[#allocation6 + $0x20] sm:$0xf]
    %v74 = vld [vmem:[#allocation6 + $0x24] sm:$0xf]
    %v75 = vld [vmem:[#allocation6 + $0x28] sm:$0xf]
    %v76 = vld [vmem:[#allocation6 + $0x2c] sm:$0xf]
    %v77 = vld [vmem:[#allocation6 + $0x30] sm:$0xf]
    %v78 = vld [vmem:[#allocation6 + $0x34] sm:$0xf]
    %v79 = vld [vmem:[#allocation6 + $0x38] sm:$0xf]
    %v80 = vld [vmem:[#allocation6 + $0x3c] sm:$0xf]
    %v81 = vld [vmem:[#allocation8] sm:$0x1]
    %v82 = vperm.slane %v81, 0
    %v99 = vunpack.c.l.b16 %v65
    %v100 = vunpack.c.l.b16 %v66
    %v101 = vunpack.c.l.b16 %v67
    %v102 = vunpack.c.l.b16 %v68
    %v103 = vunpack.c.l.b16 %v69
    %v104 = vunpack.c.l.b16 %v70
    %v105 = vunpack.c.l.b16 %v71
    %v106 = vunpack.c.l.b16 %v72
    %v107 = vunpack.c.l.b16 %v73
    %v108 = vunpack.c.l.b16 %v74
    %v109 = vunpack.c.l.b16 %v75
    %v110 = vunpack.c.l.b16 %v76
    %v111 = vunpack.c.l.b16 %v77
    %v112 = vunpack.c.l.b16 %v78
    %v113 = vunpack.c.l.b16 %v79
    %v114 = vunpack.c.l.b16 %v80
    %v115 = vpack.c.b16 %v100, %v99
    %v116 = vpack.c.b16 %v102, %v101
    %v117 = vpack.c.b16 %v104, %v103
    %v118 = vpack.c.b16 %v106, %v105
    %v119 = vpack.c.b16 %v108, %v107
    %v120 = vpack.c.b16 %v110, %v109
    %v121 = vpack.c.b16 %v112, %v111
    %v122 = vpack.c.b16 %v114, %v113
    %131 = vmatpush.bf16.msra.mxu0 %v122
    %132 = vmatpush.bf16.msra.mxu0 %v121
    %133 = vmatpush.bf16.msra.mxu0 %v120
    %134 = vmatpush.bf16.msra.mxu0 %v119
    %135 = vmatpush.bf16.msra.mxu0 %v118
    %136 = vmatpush.bf16.msra.mxu0 %v117
    %137 = vmatpush.bf16.msra.mxu0 %v116
    %138 = vmatpush.bf16.msra.mxu0 %v115
    %139 = vmatmul.bf16.gmra.mxu0 %v64
    %v140 = vpop.f32.mrf.mxu0
    %v141 = vadd.f32 %v82, %v140
    %v142 = vpop.f32.mrf.mxu0
    %143 = vdwg.mxu0
    %v144 = vmax.f32 %v141, 0.0
    %v145 = vpack.c.bf16 %v144, %v144
    %v146 = vld [vmem:[#allocation6 + $0x40] sm:$0xf]
    %v147 = vld [vmem:[#allocation6 + $0x44] sm:$0xf]
    %v148 = vld [vmem:[#allocation6 + $0x48] sm:$0xf]
    %v149 = vld [vmem:[#allocation6 + $0x4c] sm:$0xf]
    %v150 = vld [vmem:[#allocation6 + $0x50] sm:$0xf]
    %v151 = vld [vmem:[#allocation6 + $0x54] sm:$0xf]
    %v152 = vld [vmem:[#allocation6 + $0x58] sm:$0xf]
    %v153 = vld [vmem:[#allocation6 + $0x5c] sm:$0xf]
    %v154 = vld [vmem:[#allocation6 + $0x60] sm:$0xf]
    %v155 = vld [vmem:[#allocation6 + $0x64] sm:$0xf]
    %v156 = vld [vmem:[#allocation6 + $0x68] sm:$0xf]
    %v157 = vld [vmem:[#allocation6 + $0x6c] sm:$0xf]
    %v158 = vld [vmem:[#allocation6 + $0x70] sm:$0xf]
    %v159 = vld [vmem:[#allocation6 + $0x74] sm:$0xf]
    %v160 = vld [vmem:[#allocation6 + $0x78] sm:$0xf]
    %v161 = vld [vmem:[#allocation6 + $0x7c] sm:$0xf]
    %v162 = vld [vmem:[#allocation8 + $0x1] sm:$0x1]
    %v163 = vperm.slane %v162, 0
    %v180 = vunpack.c.l.b16 %v146
    %v181 = vunpack.c.l.b16 %v147
    %v182 = vunpack.c.l.b16 %v148
    %v183 = vunpack.c.l.b16 %v149
    %v184 = vunpack.c.l.b16 %v150
    %v185 = vunpack.c.l.b16 %v151
    %v186 = vunpack.c.l.b16 %v152
    %v187 = vunpack.c.l.b16 %v153
    %v188 = vunpack.c.l.b16 %v154
    %v189 = vunpack.c.l.b16 %v155
    %v190 = vunpack.c.l.b16 %v156
    %v191 = vunpack.c.l.b16 %v157
    %v192 = vunpack.c.l.b16 %v158
    %v193 = vunpack.c.l.b16 %v159
    %v194 = vunpack.c.l.b16 %v160
    %v195 = vunpack.c.l.b16 %v161
    %v196 = vpack.c.b16 %v181, %v180
    %v197 = vpack.c.b16 %v183, %v182
    %v198 = vpack.c.b16 %v185, %v184
    %v199 = vpack.c.b16 %v187, %v186
    %v200 = vpack.c.b16 %v189, %v188
    %v201 = vpack.c.b16 %v191, %v190
    %v202 = vpack.c.b16 %v193, %v192
    %v203 = vpack.c.b16 %v195, %v194
    %212 = vmatpush.bf16.msra.mxu0 %v203
    %213 = vmatpush.bf16.msra.mxu0 %v202
    %214 = vmatpush.bf16.msra.mxu0 %v201
    %215 = vmatpush.bf16.msra.mxu0 %v200
    %216 = vmatpush.bf16.msra.mxu0 %v199
    %217 = vmatpush.bf16.msra.mxu0 %v198
    %218 = vmatpush.bf16.msra.mxu0 %v197
    %219 = vmatpush.bf16.msra.mxu0 %v196
    %220 = vmatmul.bf16.gmra.mxu0 %v145
    %v221 = vpop.f32.mrf.mxu0
    %v222 = vadd.f32 %v163, %v221
    %v223 = vpop.f32.mrf.mxu0
    %224 = vdwg.mxu0
    %v225 = vmax.f32 %v222, 0.0
    %v226 = vpack.c.bf16 %v225, %v225
    %v227 = vld [vmem:[#allocation6 + $0x80] sm:$0xf]
    %v228 = vld [vmem:[#allocation6 + $0x84] sm:$0xf]
    %v229 = vld [vmem:[#allocation6 + $0x88] sm:$0xf]
    %v230 = vld [vmem:[#allocation6 + $0x8c] sm:$0xf]
    %v231 = vld [vmem:[#allocation6 + $0x90] sm:$0xf]
    %v232 = vld [vmem:[#allocation6 + $0x94] sm:$0xf]
    %v233 = vld [vmem:[#allocation6 + $0x98] sm:$0xf]
    %v234 = vld [vmem:[#allocation6 + $0x9c] sm:$0xf]
    %v235 = vld [vmem:[#allocation6 + $0xa0] sm:$0xf]
    %v236 = vld [vmem:[#allocation6 + $0xa4] sm:$0xf]
    %v237 = vld [vmem:[#allocation6 + $0xa8] sm:$0xf]
    %v238 = vld [vmem:[#allocation6 + $0xac] sm:$0xf]
    %v239 = vld [vmem:[#allocation6 + $0xb0] sm:$0xf]
    %v240 = vld [vmem:[#allocation6 + $0xb4] sm:$0xf]
    %v241 = vld [vmem:[#allocation6 + $0xb8] sm:$0xf]
    %v242 = vld [vmem:[#allocation6 + $0xbc] sm:$0xf]
    %v243 = vld [vmem:[#allocation8 + $0x2] sm:$0x1]
    %v244 = vperm.slane %v243, 0
    %v261 = vunpack.c.l.b16 %v227
    %v262 = vunpack.c.l.b16 %v228
    %v263 = vunpack.c.l.b16 %v229
    %v264 = vunpack.c.l.b16 %v230
    %v265 = vunpack.c.l.b16 %v231
    %v266 = vunpack.c.l.b16 %v232
    %v267 = vunpack.c.l.b16 %v233
    %v268 = vunpack.c.l.b16 %v234
    %v269 = vunpack.c.l.b16 %v235
    %v270 = vunpack.c.l.b16 %v236
    %v271 = vunpack.c.l.b16 %v237
    %v272 = vunpack.c.l.b16 %v238
    %v273 = vunpack.c.l.b16 %v239
    %v274 = vunpack.c.l.b16 %v240
    %v275 = vunpack.c.l.b16 %v241
    %v276 = vunpack.c.l.b16 %v242
    %v277 = vpack.c.b16 %v262, %v261
    %v278 = vpack.c.b16 %v264, %v263
    %v279 = vpack.c.b16 %v266, %v265
    %v280 = vpack.c.b16 %v268, %v267
    %v281 = vpack.c.b16 %v270, %v269
    %v282 = vpack.c.b16 %v272, %v271
    %v283 = vpack.c.b16 %v274, %v273
    %v284 = vpack.c.b16 %v276, %v275
    %293 = vmatpush.bf16.msra.mxu0 %v284
    %294 = vmatpush.bf16.msra.mxu0 %v283
    %295 = vmatpush.bf16.msra.mxu0 %v282
    %296 = vmatpush.bf16.msra.mxu0 %v281
    %297 = vmatpush.bf16.msra.mxu0 %v280
    %298 = vmatpush.bf16.msra.mxu0 %v279
    %299 = vmatpush.bf16.msra.mxu0 %v278
    %300 = vmatpush.bf16.msra.mxu0 %v277
    %301 = vmatmul.bf16.gmra.mxu0 %v226
    %v302 = vpop.f32.mrf.mxu0
    %v303 = vadd.f32 %v244, %v302
    %v304 = vpop.f32.mrf.mxu0
    %305 = vdwg.mxu0
    %v306 = vmax.f32 %v303, 0.0
    %v307 = vpack.c.bf16 %v306, %v306
    %v308 = vld [vmem:[#allocation6 + $0xc0] sm:$0xf]
    %v309 = vld [vmem:[#allocation6 + $0xc4] sm:$0xf]
    %v310 = vld [vmem:[#allocation6 + $0xc8] sm:$0xf]
    %v311 = vld [vmem:[#allocation6 + $0xcc] sm:$0xf]
    %v312 = vld [vmem:[#allocation6 + $0xd0] sm:$0xf]
    %v313 = vld [vmem:[#allocation6 + $0xd4] sm:$0xf]
    %v314 = vld [vmem:[#allocation6 + $0xd8] sm:$0xf]
    %v315 = vld [vmem:[#allocation6 + $0xdc] sm:$0xf]
    %v316 = vld [vmem:[#allocation6 + $0xe0] sm:$0xf]
    %v317 = vld [vmem:[#allocation6 + $0xe4] sm:$0xf]
    %v318 = vld [vmem:[#allocation6 + $0xe8] sm:$0xf]
    %v319 = vld [vmem:[#allocation6 + $0xec] sm:$0xf]
    %v320 = vld [vmem:[#allocation6 + $0xf0] sm:$0xf]
    %v321 = vld [vmem:[#allocation6 + $0xf4] sm:$0xf]
    %v322 = vld [vmem:[#allocation6 + $0xf8] sm:$0xf]
    %v323 = vld [vmem:[#allocation6 + $0xfc] sm:$0xf]
    %v324 = vld [vmem:[#allocation8 + $0x3] sm:$0x1]
    %v325 = vperm.slane %v324, 0
    %v342 = vunpack.c.l.b16 %v308
    %v343 = vunpack.c.l.b16 %v309
    %v344 = vunpack.c.l.b16 %v310
    %v345 = vunpack.c.l.b16 %v311
    %v346 = vunpack.c.l.b16 %v312
    %v347 = vunpack.c.l.b16 %v313
    %v348 = vunpack.c.l.b16 %v314
    %v349 = vunpack.c.l.b16 %v315
    %v350 = vunpack.c.l.b16 %v316
    %v351 = vunpack.c.l.b16 %v317
    %v352 = vunpack.c.l.b16 %v318
    %v353 = vunpack.c.l.b16 %v319
    %v354 = vunpack.c.l.b16 %v320
    %v355 = vunpack.c.l.b16 %v321
    %v356 = vunpack.c.l.b16 %v322
    %v357 = vunpack.c.l.b16 %v323
    %v358 = vpack.c.b16 %v343, %v342
    %v359 = vpack.c.b16 %v345, %v344
    %v360 = vpack.c.b16 %v347, %v346
    %v361 = vpack.c.b16 %v349, %v348
    %v362 = vpack.c.b16 %v351, %v350
    %v363 = vpack.c.b16 %v353, %v352
    %v364 = vpack.c.b16 %v355, %v354
    %v365 = vpack.c.b16 %v357, %v356
    %374 = vmatpush.bf16.msra.mxu0 %v365
    %375 = vmatpush.bf16.msra.mxu0 %v364
    %376 = vmatpush.bf16.msra.mxu0 %v363
    %377 = vmatpush.bf16.msra.mxu0 %v362
    %378 = vmatpush.bf16.msra.mxu0 %v361
    %379 = vmatpush.bf16.msra.mxu0 %v360
    %380 = vmatpush.bf16.msra.mxu0 %v359
    %381 = vmatpush.bf16.msra.mxu0 %v358
    %382 = vmatmul.bf16.gmra.mxu0 %v307
    %v383 = vpop.f32.mrf.mxu0
    %v384 = vadd.f32 %v325, %v383
    %v385 = vpop.f32.mrf.mxu0
    %386 = vdwg.mxu0
    %v387 = vmax.f32 %v384, 0.0
    %v388 = vpack.c.bf16 %v387, %v387
    %v389 = vld [vmem:[#allocation6 + $0x100] sm:$0xf]
    %v390 = vld [vmem:[#allocation6 + $0x104] sm:$0xf]
    %v391 = vld [vmem:[#allocation6 + $0x108] sm:$0xf]
    %v392 = vld [vmem:[#allocation6 + $0x10c] sm:$0xf]
    %v393 = vld [vmem:[#allocation6 + $0x110] sm:$0xf]
    %v394 = vld [vmem:[#allocation6 + $0x114] sm:$0xf]
    %v395 = vld [vmem:[#allocation6 + $0x118] sm:$0xf]
    %v396 = vld [vmem:[#allocation6 + $0x11c] sm:$0xf]
    %v397 = vld [vmem:[#allocation6 + $0x120] sm:$0xf]
    %v398 = vld [vmem:[#allocation6 + $0x124] sm:$0xf]
    %v399 = vld [vmem:[#allocation6 + $0x128] sm:$0xf]
    %v400 = vld [vmem:[#allocation6 + $0x12c] sm:$0xf]
    %v401 = vld [vmem:[#allocation6 + $0x130] sm:$0xf]
    %v402 = vld [vmem:[#allocation6 + $0x134] sm:$0xf]
    %v403 = vld [vmem:[#allocation6 + $0x138] sm:$0xf]
    %v404 = vld [vmem:[#allocation6 + $0x13c] sm:$0xf]
    %v405 = vld [vmem:[#allocation8 + $0x4] sm:$0x1]
    %v406 = vperm.slane %v405, 0
    %v423 = vunpack.c.l.b16 %v389
    %v424 = vunpack.c.l.b16 %v390
    %v425 = vunpack.c.l.b16 %v391
    %v426 = vunpack.c.l.b16 %v392
    %v427 = vunpack.c.l.b16 %v393
    %v428 = vunpack.c.l.b16 %v394
    %v429 = vunpack.c.l.b16 %v395
    %v430 = vunpack.c.l.b16 %v396
    %v431 = vunpack.c.l.b16 %v397
    %v432 = vunpack.c.l.b16 %v398
    %v433 = vunpack.c.l.b16 %v399
    %v434 = vunpack.c.l.b16 %v400
    %v435 = vunpack.c.l.b16 %v401
    %v436 = vunpack.c.l.b16 %v402
    %v437 = vunpack.c.l.b16 %v403
    %v438 = vunpack.c.l.b16 %v404
    %v439 = vpack.c.b16 %v424, %v423
    %v440 = vpack.c.b16 %v426, %v425
    %v441 = vpack.c.b16 %v428, %v427
    %v442 = vpack.c.b16 %v430, %v429
    %v443 = vpack.c.b16 %v432, %v431
    %v444 = vpack.c.b16 %v434, %v433
    %v445 = vpack.c.b16 %v436, %v435
    %v446 = vpack.c.b16 %v438, %v437
    %455 = vmatpush.bf16.msra.mxu0 %v446
    %456 = vmatpush.bf16.msra.mxu0 %v445
    %457 = vmatpush.bf16.msra.mxu0 %v444
    %458 = vmatpush.bf16.msra.mxu0 %v443
    %459 = vmatpush.bf16.msra.mxu0 %v442
    %460 = vmatpush.bf16.msra.mxu0 %v441
    %461 = vmatpush.bf16.msra.mxu0 %v440
    %462 = vmatpush.bf16.msra.mxu0 %v439
    %463 = vmatmul.bf16.gmra.mxu0 %v388
    %v464 = vpop.f32.mrf.mxu0
    %v465 = vadd.f32 %v406, %v464
    %v466 = vpop.f32.mrf.mxu0
    %467 = vdwg.mxu0
    %vm468 = vcmask 72704
    %469 = vst.msk [vmem:[#allocation9] sm:$0xff] %vm468, %v465
    // Predicated region
    $region26: #{tpu_custom_call.1} parent=1 // pred_check
      _
    $region27: #{tpu_custom_call.1} parent=1 // pred_check_branch
      %471 = sbr.rel (0) target = $region29
    $region28: #{tpu_custom_call.1} parent=1 // pred_region
      %473 = vsyncadd [#allocation5], 0
      %s475 = sshll.u32 [#allocation9], 4
      %s476 = int_to_ptr.vmem [resolvable:$true] %s475
      %s477 = sshll.u32 %s3, 4
      %s478 = int_to_ptr.hbm [resolvable:$true] %s477
      %480 = dma.vmem_to_hbm [thread:$0]  %s476, 128, %s478, [#allocation5]
    $region29: #{tpu_custom_call.1} parent=1 // pred_fallthru
      _
    // Predicated region
    $region30: #{tpu_custom_call.1} parent=1 // pred_check
      _
    $region31: #{tpu_custom_call.1} parent=1 // pred_check_branch
      %482 = sbr.rel (0) target = $region33
    $region32: #{tpu_custom_call.1} parent=1 // pred_region
      %484 = dma.done [#allocation5], 128
    $region33: #{tpu_custom_call.1} parent=1 // pred_fallthru
      _
    %485 = vsyncpa [#allocation4], 1
    %486 = vsyncpa [#allocation7], 1
    %487 = vsyncpa [#allocation5], 1

</llo_original>
